<compile_context>
chip_gen: v5e
topology: v5e:2x2
jax: 0.10.0
libtpu: 0.0.40
codegen_flags: <defaults>
</compile_context>

<pallas_src>
import jax
import jax.numpy as jnp
from jax.experimental import pallas as pl
from jax.experimental.pallas import tpu as pltpu

EPS = 1e-3


# --------------------------------------------------------------------------
# Kernels
# --------------------------------------------------------------------------
def _make_stats_kernel(hw_total, hw_tile, need_mask):
    """Pass 1: per-row (= per (n, c)) partial sum / sum-of-squares in f32."""

    def kernel(x_ref, psum_ref, pssq_ref):
        t = pl.program_id(1)  # reduction axis (last), accumulators resident

        @pl.when(t == 0)
        def _():
            psum_ref[...] = jnp.zeros_like(psum_ref)
            pssq_ref[...] = jnp.zeros_like(pssq_ref)

        x = x_ref[...].astype(jnp.float32)
        if need_mask:  # ragged last hw tile: zero out-of-range lanes
            lane = jax.lax.broadcasted_iota(jnp.int32, x.shape, x.ndim - 1)
            x = jnp.where(t * hw_tile + lane < hw_total, x, 0.0)
        # Cross-lane reduce lands on the XLU, which has slack in this
        # HBM-bandwidth-bound kernel.
        psum_ref[...] += jnp.sum(x, axis=-1, keepdims=True)
        pssq_ref[...] += jnp.sum(x * x, axis=-1, keepdims=True)

    return kernel


def _norm_prelu_kernel(x_ref, params_ref, o_ref):
    """Pass 2: y = x*scale + shift; out = where(y>=0, y, alpha*y)."""
    x = x_ref[...].astype(jnp.float32)
    scale = params_ref[0]   # (row_tile, 1), broadcast over lanes
    shift = params_ref[1]
    alpha = params_ref[2]
    y = x * scale + shift
    o_ref[...] = jnp.where(y >= 0.0, y, alpha * y).astype(o_ref.dtype)


def _resident_kernel(x_ref, g_ref, b_ref, a_ref, o_ref):
    """Single-pass path: whole tensor resident in VMEM (read once, write once)."""
    x = x_ref[...].astype(jnp.float32)            # (N, C, HW)
    count = x.shape[0] * x.shape[2]
    s = jnp.sum(x, axis=(0, 2), keepdims=True)    # (1, C, 1)
    ss = jnp.sum(x * x, axis=(0, 2), keepdims=True)
    mean = s / count
    var = jnp.maximum(ss / count - mean * mean, 0.0)
    scale = g_ref[...] * jax.lax.rsqrt(var + EPS)
    shift = b_ref[...] - mean * scale
    y = x * scale + shift
    o_ref[...] = jnp.where(y >= 0.0, y, a_ref[...] * y).astype(o_ref.dtype)


# --------------------------------------------------------------------------
# Wrapper
# --------------------------------------------------------------------------
def _vmem_capacity_bytes():
    try:
        return int(pltpu.get_tpu_info().vmem_capacity_bytes)
    except Exception:
        return 64 << 20  # conservative fallback (v7x per-core VMEM)


def _pick_tiles(rows, hw, itemsize, budget_bytes):
    """Row tile: full-extent or multiple of 8.  HW tile: multiple of 128."""
    row_tile = rows if rows <= 256 else 256
    if hw <= 128:
        hw_tile = hw  # full-extent lane block (legal even if < 128)
    else:
        max_lanes = max(128, budget_bytes // (row_tile * itemsize))
        max_lanes = (max_lanes // 128) * 128
        hw_tile = min(max_lanes, (hw // 128) * 128)
    return row_tile, hw_tile


def bn_prelu(x_nchw, gamma, beta, alpha, *, force_tiled=False):
    """Training-mode BatchNorm2d(eps=1e-3) + PReLU.  x: (N,C,H,W); params: (C,)."""
    N, C, H, W = x_nchw.shape
    HW = H * W
    rows = N * C
    f32 = jnp.float32

    vmem_cap = _vmem_capacity_bytes()
    vmem_limit = int(min(0.7 * vmem_cap, 96 << 20))

    # ---------------- single-pass VMEM-resident path ----------------
    # in + out + f32 working copies; only 2x HBM traffic and no epilogue.
    est_resident = rows * HW * (2 * x_nchw.dtype.itemsize + 4 * 4)
    if (not force_tiled) and est_resident <= vmem_limit // 2:
        x3 = x_nchw.reshape(N, C, HW)  # free reshape, no transpose
        g = gamma.reshape(1, C, 1).astype(f32)
        b = beta.reshape(1, C, 1).astype(f32)
        a = alpha.reshape(1, C, 1).astype(f32)
        out3 = pl.pallas_call(
            _resident_kernel,
            out_shape=jax.ShapeDtypeStruct((N, C, HW), x_nchw.dtype),
            grid=(1,),
            in_specs=[
                pl.BlockSpec((N, C, HW), lambda i: (0, 0, 0)),
                pl.BlockSpec((1, C, 1), lambda i: (0, 0, 0)),
                pl.BlockSpec((1, C, 1), lambda i: (0, 0, 0)),
                pl.BlockSpec((1, C, 1), lambda i: (0, 0, 0)),
            ],
            out_specs=pl.BlockSpec((N, C, HW), lambda i: (0, 0, 0)),
            compiler_params=pltpu.CompilerParams(
                dimension_semantics=("arbitrary",),
                vmem_limit_bytes=vmem_limit,
            ),
        )(x3, g, b, a)
        return out3.reshape(N, C, H, W)

    # ---------------- two-pass tiled (streaming) path ----------------
    x2 = x_nchw.reshape(rows, HW)  # free reshape: rows on sublanes, HW on lanes
    row_tile, hw_tile = _pick_tiles(rows, HW, max(x2.dtype.itemsize, 4), 4 << 20)
    n_row = pl.cdiv(rows, row_tile)
    n_hw = pl.cdiv(HW, hw_tile)
    need_mask = (HW % hw_tile) != 0

    # pass 1: per-row partial sums (accumulators resident across the hw axis).
    psum, pssq = pl.pallas_call(
        _make_stats_kernel(HW, hw_tile, need_mask),
        out_shape=(
            jax.ShapeDtypeStruct((rows, 1), f32),
            jax.ShapeDtypeStruct((rows, 1), f32),
        ),
        grid=(n_row, n_hw),
        in_specs=[pl.BlockSpec((row_tile, hw_tile), lambda r, t: (r, t))],
        out_specs=(
            pl.BlockSpec((row_tile, 1), lambda r, t: (r, 0)),
            pl.BlockSpec((row_tile, 1), lambda r, t: (r, 0)),
        ),
        compiler_params=pltpu.CompilerParams(
            dimension_semantics=("parallel", "arbitrary"),
            vmem_limit_bytes=vmem_limit,
        ),
    )(x2)

    # tiny O(N*C) epilogue: finish reduction over N, derive per-channel
    # scale/shift, and pack per-row params for pass 2.
    count = f32(N * HW)
    s_c = psum[:, 0].reshape(N, C).sum(axis=0)
    ss_c = pssq[:, 0].reshape(N, C).sum(axis=0)
    mean = s_c / count
    # TODO(synk): E[x^2]-mean^2 in f32 can lose precision when |mean| >> std
    # for very large N*H*W; a shifted/Welford-style merge would be more robust.
    var = jnp.maximum(ss_c / count - mean * mean, 0.0)
    scale_c = gamma.astype(f32) * jax.lax.rsqrt(var + EPS)
    shift_c = beta.astype(f32) - mean * scale_c
    params = jnp.stack([scale_c, shift_c, alpha.astype(f32)])     # (3, C)
    params = jnp.broadcast_to(params[:, None, :], (3, N, C))      # per (n, c) row
    params = params.reshape(3, rows, 1)

    # pass 2: fused normalize + PReLU (fully parallel, lane-dense stores).
    out2 = pl.pallas_call(
        _norm_prelu_kernel,
        out_shape=jax.ShapeDtypeStruct((rows, HW), x2.dtype),
        grid=(n_row, n_hw),
        in_specs=[
            pl.BlockSpec((row_tile, hw_tile), lambda r, t: (r, t)),
            pl.BlockSpec((3, row_tile, 1), lambda r, t: (0, r, 0)),
        ],
        out_specs=pl.BlockSpec((row_tile, hw_tile), lambda r, t: (r, t)),
        compiler_params=pltpu.CompilerParams(
            dimension_semantics=("parallel", "parallel"),
            vmem_limit_bytes=vmem_limit,
        ),
    )(x2, params)
    return out2.reshape(N, C, H, W)


# --------------------------------------------------------------------------
# Reference + test
# --------------------------------------------------------------------------
def _reference(x_nchw, gamma, beta, alpha):
    x = x_nchw.astype(jnp.float32)
    mean = jnp.mean(x, axis=(0, 2, 3), keepdims=True)
    var = jnp.mean((x - mean) ** 2, axis=(0, 2, 3), keepdims=True)
    y = (x - mean) / jnp.sqrt(var + EPS)
    y = y * gamma.reshape(1, -1, 1, 1) + beta.reshape(1, -1, 1, 1)
    return jnp.where(y >= 0, y, alpha.reshape(1, -1, 1, 1) * y).astype(x_nchw.dtype)


if __name__ == "__main__":
    key = jax.random.PRNGKey(0)
    kx, kg, kb, kx2 = jax.random.split(key, 4)

    C = 4
    # PyTorch defaults: gamma=1, beta=0, PReLU alpha=0.25; perturb gamma/beta
    # so the affine path is exercised.
    gamma = jnp.ones((C,), jnp.float32) + 0.1 * jax.random.normal(kg, (C,), jnp.float32)
    beta = 0.1 * jax.random.normal(kb, (C,), jnp.float32)
    alpha = jnp.full((C,), 0.25, jnp.float32)

    # 1) small tensor -> single-pass VMEM-resident kernel
    x = jax.random.normal(kx, (2, C, 16, 16), dtype=jnp.float32)
    out = jax.block_until_ready(bn_prelu(x, gamma, beta, alpha))
    assert out.shape == x.shape
    assert jnp.allclose(out, _reference(x, gamma, beta, alpha), atol=1e-5, rtol=1e-5)

    # 2) forced two-pass tiled path with ragged H*W (exercises cdiv + lane mask)
    xr = jax.random.normal(kx2, (2, C, 10, 13), dtype=jnp.float32)
    outr = jax.block_until_ready(bn_prelu(xr, gamma, beta, alpha, force_tiled=True))
    assert outr.shape == xr.shape
    assert jnp.allclose(outr, _reference(xr, gamma, beta, alpha), atol=1e-5, rtol=1e-5)

    # 3) forced tiled path on the lane-aligned shape (unmasked variant)
    outt = jax.block_until_ready(bn_prelu(x, gamma, beta, alpha, force_tiled=True))
    assert jnp.allclose(outt, _reference(x, gamma, beta, alpha), atol=1e-5, rtol=1e-5)

    print("KERNEL_OK")
</pallas_src>

<mosaic_0001>
module attributes {stable_mosaic.version = 11 : i64} {
  func.func @_resident_kernel(%arg0: i32, %arg1: memref<2x4x256xf32, #tpu.memory_space<vmem>>, %arg2: memref<1x4x1xf32, #tpu.memory_space<vmem>>, %arg3: memref<1x4x1xf32, #tpu.memory_space<vmem>>, %arg4: memref<1x4x1xf32, #tpu.memory_space<vmem>>, %arg5: memref<2x4x256xf32, #tpu.memory_space<vmem>>) attributes {dimension_semantics = [#tpu.dimension_semantics<arbitrary>], iteration_bounds = array<i64: 1>, scalar_prefetch = 0 : i64, scratch_operands = 0 : i64, tpu.core_type = #tpu.core_type<tc>, window_params = [{pipeline_mode = #tpu.pipeline_mode<synchronous>, transform_indices = @transform_0, window_bounds = array<i64: 2, 4, 256>}, {pipeline_mode = #tpu.pipeline_mode<synchronous>, transform_indices = @transform_1, window_bounds = array<i64: 1, 4, 1>}, {pipeline_mode = #tpu.pipeline_mode<synchronous>, transform_indices = @transform_2, window_bounds = array<i64: 1, 4, 1>}, {pipeline_mode = #tpu.pipeline_mode<synchronous>, transform_indices = @transform_3, window_bounds = array<i64: 1, 4, 1>}, {pipeline_mode = #tpu.pipeline_mode<synchronous>, transform_indices = @transform_4, window_bounds = array<i64: 2, 4, 256>}]} {
    %c0 = arith.constant 0 : index
    %c0_0 = arith.constant 0 : index
    %c0_1 = arith.constant 0 : index
    %0 = vector.load %arg1[%c0, %c0_0, %c0_1] : memref<2x4x256xf32, #tpu.memory_space<vmem>>, vector<2x4x256xf32>
    %cst = arith.constant dense<0.000000e+00> : vector<4xf32>
    %1 = vector.multi_reduction <add>, %0, %cst [0, 2] : vector<2x4x256xf32> to vector<4xf32>
    %2 = vector.shape_cast %1 : vector<4xf32> to vector<1x4x1xf32>
    %3 = arith.mulf %0, %0 : vector<2x4x256xf32>
    %cst_2 = arith.constant dense<0.000000e+00> : vector<4xf32>
    %4 = vector.multi_reduction <add>, %3, %cst_2 [0, 2] : vector<2x4x256xf32> to vector<4xf32>
    %5 = vector.shape_cast %4 : vector<4xf32> to vector<1x4x1xf32>
    %cst_3 = arith.constant 5.120000e+02 : f32
    %6 = vector.broadcast %cst_3 : f32 to vector<1x4x1xf32>
    %7 = arith.divf %2, %6 : vector<1x4x1xf32>
    %cst_4 = arith.constant 5.120000e+02 : f32
    %8 = vector.broadcast %cst_4 : f32 to vector<1x4x1xf32>
    %9 = arith.divf %5, %8 : vector<1x4x1xf32>
    %10 = arith.mulf %7, %7 : vector<1x4x1xf32>
    %11 = arith.subf %9, %10 : vector<1x4x1xf32>
    %cst_5 = arith.constant 0.000000e+00 : f32
    %12 = vector.broadcast %cst_5 : f32 to vector<1x4x1xf32>
    %13 = arith.maximumf %11, %12 : vector<1x4x1xf32>
    %c0_6 = arith.constant 0 : index
    %c0_7 = arith.constant 0 : index
    %c0_8 = arith.constant 0 : index
    %14 = vector.load %arg2[%c0_6, %c0_7, %c0_8] : memref<1x4x1xf32, #tpu.memory_space<vmem>>, vector<1x4x1xf32>
    %cst_9 = arith.constant 1.000000e-03 : f32
    %15 = vector.broadcast %cst_9 : f32 to vector<1x4x1xf32>
    %16 = arith.addf %13, %15 : vector<1x4x1xf32>
    %17 = math.rsqrt %16 : vector<1x4x1xf32>
    %18 = arith.mulf %14, %17 : vector<1x4x1xf32>
    %c0_10 = arith.constant 0 : index
    %c0_11 = arith.constant 0 : index
    %c0_12 = arith.constant 0 : index
    %19 = vector.load %arg3[%c0_10, %c0_11, %c0_12] : memref<1x4x1xf32, #tpu.memory_space<vmem>>, vector<1x4x1xf32>
    %20 = arith.mulf %7, %18 : vector<1x4x1xf32>
    %21 = arith.subf %19, %20 : vector<1x4x1xf32>
    %22 = vector.broadcast %18 : vector<1x4x1xf32> to vector<2x4x256xf32>
    %23 = arith.mulf %0, %22 : vector<2x4x256xf32>
    %24 = vector.broadcast %21 : vector<1x4x1xf32> to vector<2x4x256xf32>
    %25 = arith.addf %23, %24 : vector<2x4x256xf32>
    %cst_13 = arith.constant 0.000000e+00 : f32
    %26 = vector.broadcast %cst_13 : f32 to vector<2x4x256xf32>
    %27 = arith.cmpf oge, %25, %26 : vector<2x4x256xf32>
    %c0_14 = arith.constant 0 : index
    %c0_15 = arith.constant 0 : index
    %c0_16 = arith.constant 0 : index
    %28 = vector.load %arg4[%c0_14, %c0_15, %c0_16] : memref<1x4x1xf32, #tpu.memory_space<vmem>>, vector<1x4x1xf32>
    %29 = vector.broadcast %28 : vector<1x4x1xf32> to vector<2x4x256xf32>
    %30 = arith.mulf %29, %25 : vector<2x4x256xf32>
    %31 = arith.select %27, %25, %30 : vector<2x4x256xi1>, vector<2x4x256xf32>
    %c0_17 = arith.constant 0 : index
    %c0_18 = arith.constant 0 : index
    %c0_19 = arith.constant 0 : index
    %32 = vector.load %arg5[%c0_17, %c0_18, %c0_19] : memref<2x4x256xf32, #tpu.memory_space<vmem>>, vector<2x4x256xf32>
    tpu.vector_store %arg5[%c0_17, %c0_18, %c0_19], %31 {strides = array<i32>} : memref<2x4x256xf32, #tpu.memory_space<vmem>>, vector<2x4x256xf32>,
    return
  }
  func.func @transform_0(%arg0: i32) -> (i32, i32, i32) {
    %c0_i32 = arith.constant 0 : i32
    %c0_i32_0 = arith.constant 0 : i32
    %c0_i32_1 = arith.constant 0 : i32
    %c0_i32_2 = arith.constant 0 : i32
    return %c0_i32, %c0_i32_0, %c0_i32_1 : i32, i32, i32
  }
  func.func @transform_1(%arg0: i32) -> (i32, i32, i32) {
    %c0_i32 = arith.constant 0 : i32
    %c0_i32_0 = arith.constant 0 : i32
    %c0_i32_1 = arith.constant 0 : i32
    %c0_i32_2 = arith.constant 0 : i32
    return %c0_i32, %c0_i32_0, %c0_i32_1 : i32, i32, i32
  }
  func.func @transform_2(%arg0: i32) -> (i32, i32, i32) {
    %c0_i32 = arith.constant 0 : i32
    %c0_i32_0 = arith.constant 0 : i32
    %c0_i32_1 = arith.constant 0 : i32
    %c0_i32_2 = arith.constant 0 : i32
    return %c0_i32, %c0_i32_0, %c0_i32_1 : i32, i32, i32
  }
  func.func @transform_3(%arg0: i32) -> (i32, i32, i32) {
    %c0_i32 = arith.constant 0 : i32
    %c0_i32_0 = arith.constant 0 : i32
    %c0_i32_1 = arith.constant 0 : i32
    %c0_i32_2 = arith.constant 0 : i32
    return %c0_i32, %c0_i32_0, %c0_i32_1 : i32, i32, i32
  }
  func.func @transform_4(%arg0: i32) -> (i32, i32, i32) {
    %c0_i32 = arith.constant 0 : i32
    %c0_i32_0 = arith.constant 0 : i32
    %c0_i32_1 = arith.constant 0 : i32
    %c0_i32_2 = arith.constant 0 : i32
    return %c0_i32, %c0_i32_0, %c0_i32_1 : i32, i32, i32
  }
}

</mosaic_0001>

<llo_original>
// kernel: tpu_custom_call.1
$region0: #{tpu_custom_call.1}
  #allocation0 [shape = 'u32[]', space=smem, size = 0x4, offset = 0x4, fixed_abs, tag = 'smem constant byte address 0x4 - core index']
  #allocation1 [shape = 'u32[72,128]{1,0:T(1,128)}', space=vmem, size = 0x9000, scoped, tag = 'internal scratch']
  %s0 = inlined_call_operand.hbm [shape: f32[2,4,256], index: 0, kind: input, shape index: {}]
  %s1 = inlined_call_operand.vmem [shape: f32[1,4,1], index: 1, kind: input, shape index: {}]
  %s2 = inlined_call_operand.vmem [shape: f32[1,4,1], index: 2, kind: input, shape index: {}]
  %s3 = inlined_call_operand.vmem [shape: f32[1,4,1], index: 3, kind: input, shape index: {}]
  %s4 = inlined_call_operand.hbm [shape: f32[2,4,256], index: 4, kind: output, shape index: {}]
  %s5 = sld [smem:[#allocation0]]
  $region30: #{tpu_custom_call.1} parent=0
    _
  %s7 = ssub.s32 1, %s5
  %s8 = scalar_select 0, %s7, %s5
  $region1: #{tpu_custom_call.1} parent=0
    #allocation2 [shape = 'u8[8192]{0}', space=vmem, size = 0x2000, scoped, tag = 'input window, operand 0, single buffered']
    #allocation3 [shape = 's32[1]{0}', space=sflag, size = 0x4, scoped, tag = 'scoped memory for tpu_custom_call.1']
    #allocation4 [shape = 's32[1]{0}', space=sflag, size = 0x4, scoped, tag = 'scoped memory for tpu_custom_call.1']
    #allocation5 [shape = 'u8[8192]{0}', space=vmem, size = 0x2000, scoped, tag = 'output window, operand 0, single buffered']
    %9 = vsyncpa [#allocation3], 0
    %10 = vsyncpa [#allocation4], 0
    // Predicated region
    $region2: #{tpu_custom_call.1} parent=1 // pred_check
      _
    $region3: #{tpu_custom_call.1} parent=1 // pred_check_branch
      %12 = sbr.rel (0) target = $region5
    $region4: #{tpu_custom_call.1} parent=1 // pred_region
      %14 = vsyncadd [#allocation3], 0
      %s15 = sshll.u32 %s0, 4
      %s16 = int_to_ptr.hbm [resolvable:$true] %s15
      %s17 = sshll.u32 [#allocation2], 4
      %s18 = int_to_ptr.vmem [resolvable:$true] %s17
      %23 = dma.hbm_to_vmem [thread:$0]  %s16, 256, %s18, [#allocation3], 128, 128, 8
    $region5: #{tpu_custom_call.1} parent=1 // pred_fallthru
      _
    // Predicated region
    $region6: #{tpu_custom_call.1} parent=1 // pred_check
      _
    $region7: #{tpu_custom_call.1} parent=1 // pred_check_branch
      %25 = sbr.rel (0) target = $region9
    $region8: #{tpu_custom_call.1} parent=1 // pred_region
      _
    $region9: #{tpu_custom_call.1} parent=1 // pred_fallthru
      _
    // Predicated region
    $region10: #{tpu_custom_call.1} parent=1 // pred_check
      _
    $region11: #{tpu_custom_call.1} parent=1 // pred_check_branch
      %27 = sbr.rel (0) target = $region13
    $region12: #{tpu_custom_call.1} parent=1 // pred_region
      _
    $region13: #{tpu_custom_call.1} parent=1 // pred_fallthru
      _
    // Predicated region
    $region14: #{tpu_custom_call.1} parent=1 // pred_check
      _
    $region15: #{tpu_custom_call.1} parent=1 // pred_check_branch
      %29 = sbr.rel (0) target = $region17
    $region16: #{tpu_custom_call.1} parent=1 // pred_region
      _
    $region17: #{tpu_custom_call.1} parent=1 // pred_fallthru
      _
    // Predicated region
    $region18: #{tpu_custom_call.1} parent=1 // pred_check
      _
    $region19: #{tpu_custom_call.1} parent=1 // pred_check_branch
      %31 = sbr.rel (0) target = $region21
    $region20: #{tpu_custom_call.1} parent=1 // pred_region
      %33 = dma.done [#allocation3], 256
    $region21: #{tpu_custom_call.1} parent=1 // pred_fallthru
      _
    %v34 = vld [vmem:[#allocation2] sm:$0xff]
    %v35 = vld [vmem:[#allocation2 + $0x8] sm:$0xff]
    %38 = vst [vmem:[#allocation1] ss:$2 sm:$0xff] %v34
    %v39 = vld.sshfl [vmem:[#allocation1] sm:$0xff pattern:$0x75316420]
    %v40 = vld.sshfl [vmem:[#allocation1 + $0x8] sm:$0xff pattern:$0x75316420]
    %s41 = scalar_lea.vmem [#allocation1], 16
    %42 = vst [vmem:[%s41] ss:$2 sm:$0xff] %v35
    %v43 = vld.sshfl [vmem:[#allocation1 + $0x10] sm:$0xff pattern:$0x75316420]
    %v44 = vld.sshfl [vmem:[#allocation1 + $0x18] sm:$0xff pattern:$0x75316420]
    %vm49 = vcmask 1043456
    %v50 = vsel %vm49, %v39, 0.0
    %v51 = vsel %vm49, %v40, 0.0
    %v52 = vadd.f32 %v50, %v51
    %v53 = vsel %vm49, %v43, 0.0
    %v54 = vadd.f32 %v52, %v53
    %v55 = vsel %vm49, %v44, 0.0
    %v56 = vadd.f32 %v54, %v55
    %57 = vadd.xlane.f32.xlu0 %v56
    %v58 = vpop.xlane.xlu0 %57
    %v59 = vmul.f32 %v34, %v34
    %v60 = vmul.f32 %v35, %v35
    %63 = vst [vmem:[#allocation1] ss:$2 sm:$0xff] %v59
    %v64 = vld.sshfl [vmem:[#allocation1] sm:$0xff pattern:$0x75316420]
    %v65 = vld.sshfl [vmem:[#allocation1 + $0x8] sm:$0xff pattern:$0x75316420]
    %s66 = scalar_lea.vmem [#allocation1], 16
    %67 = vst [vmem:[%s66] ss:$2 sm:$0xff] %v60
    %v68 = vld.sshfl [vmem:[#allocation1 + $0x10] sm:$0xff pattern:$0x75316420]
    %v69 = vld.sshfl [vmem:[#allocation1 + $0x18] sm:$0xff pattern:$0x75316420]
    %v74 = vsel %vm49, %v64, 0.0
    %v75 = vsel %vm49, %v65, 0.0
    %v76 = vadd.f32 %v74, %v75
    %v77 = vsel %vm49, %v68, 0.0
    %v78 = vadd.f32 %v76, %v77
    %v79 = vsel %vm49, %v69, 0.0
    %v80 = vadd.f32 %v78, %v79
    %81 = vadd.xlane.f32.xlu0 %v80
    %v82 = vpop.xlane.xlu0 %81
    %v83 = vrcp.pop 512.0
    %v84 = vmul.f32 512.0, %v83
    %v85 = vsub.f32 1.0, %v84
    %v86 = vmul.f32 %v83, %v85
    %v87 = vadd.f32 %v83, %v86
    %vm88 = vweird.f32 %v83
    %v89 = vsel %vm88, %v83, %v87
    %v90 = vmul.f32 %v58, %v89
    %v91 = vmul.f32 %v82, %v89
    %v92 = vmul.f32 %v90, %v90
    %v93 = vsub.f32 %v91, %v92
    %v94 = vmax.f32 %v93, 0.0
    %v95 = vld [vmem:[%s1] sm:$0xf]
    %v96 = vadd.f32 %v94, 0.001
    %v97 = vrsqrt.pop %v96
    %v98 = vmul.f32 %v97, %v96
    %v99 = vmul.f32 %v98, %v97
    %v100 = vmul.f32 0.5, %v99
    %v101 = vsub.f32 1.5, %v100
    %v102 = vmul.f32 %v97, %v101
    %vm103 = vweird.f32 %v96
    %vm104 = vweird.f32 %v97
    %vm105 = vmor %vm103, %vm104
    %v106 = vsel %vm105, %v97, %v102
    %v107 = vmul.f32 %v95, %v106
    %v108 = vld [vmem:[%s2] sm:$0xf]
    %v109 = vmul.f32 %v90, %v107
    %v110 = vsub.f32 %v108, %v109
    %112 = vset.pattern.permute.xlu0 0
    %113 = vperm.xlu0 %112, %v107
    %v114 = vpop.permute.xlu0 %113
    %v116 = vunpack.c.l.s4 839922192
    %v117 = vunpack.c.0.s8 %v116
    %v118 = vperm.slane %v114, %v117
    %v120 = vmul.f32 %v34, %v118
    %v121 = vmul.f32 %v35, %v118
    %123 = vset.pattern.permute.xlu0 0
    %124 = vperm.xlu0 %123, %v110
    %v125 = vpop.permute.xlu0 %124
    %v127 = vunpack.c.l.s4 839922192
    %v128 = vunpack.c.0.s8 %v127
    %v129 = vperm.slane %v125, %v128
    %v131 = vadd.f32 %v120, %v129
    %v132 = vadd.f32 %v121, %v129
    %vm133 = vcmp.ge.f32.partialorder %v131, 0.0
    %vm134 = vcmp.ge.f32.partialorder %v132, 0.0
    %v135 = vld [vmem:[%s3] sm:$0xf]
    %137 = vset.pattern.permute.xlu0 0
    %138 = vperm.xlu0 %137, %v135
    %v139 = vpop.permute.xlu0 %138
    %143 = vst [vmem:[#allocation1] ss:$2 sm:$0xff] %v131
    %v144 = vld.sshfl [vmem:[#allocation1] sm:$0xff pattern:$0x75316420]
    %v145 = vld.sshfl [vmem:[#allocation1 + $0x8] sm:$0xff pattern:$0x75316420]
    %s146 = scalar_lea.vmem [#allocation1], 16
    %147 = vst [vmem:[%s146] ss:$2 sm:$0xff] %v132
    %v148 = vld.sshfl [vmem:[#allocation1 + $0x10] sm:$0xff pattern:$0x75316420]
    %v149 = vld.sshfl [vmem:[#allocation1 + $0x18] sm:$0xff pattern:$0x75316420]
    %v154 = vmul.f32 %v139, %v144
    %v155 = vmul.f32 %v139, %v145
    %v156 = vmul.f32 %v139, %v148
    %v157 = vmul.f32 %v139, %v149
    %v162 = vrot.slane %v155, 4
    %v163 = vrot.slane %v157, 4
    %v164 = vsel %vm49, %v154, %v162
    %v165 = vsel %vm49, %v156, %v163
    %v168 = vsel %vm133, %v131, %v164
    %v169 = vsel %vm134, %v132, %v165
    %170 = vst [vmem:[#allocation5] sm:$0xff] %v168
    %171 = vst [vmem:[#allocation5 + $0x8] sm:$0xff] %v169
    // Predicated region
    $region22: #{tpu_custom_call.1} parent=1 // pred_check
      _
    $region23: #{tpu_custom_call.1} parent=1 // pred_check_branch
      %173 = sbr.rel (0) target = $region25
    $region24: #{tpu_custom_call.1} parent=1 // pred_region
      %175 = vsyncadd [#allocation4], 0
      %s176 = sshll.u32 [#allocation5], 4
      %s177 = int_to_ptr.vmem [resolvable:$true] %s176
      %s178 = sshll.u32 %s4, 4
      %s179 = int_to_ptr.hbm [resolvable:$true] %s178
      %184 = dma.vmem_to_hbm [thread:$0]  %s177, 256, %s179, [#allocation4], 128, 128, 8
    $region25: #{tpu_custom_call.1} parent=1 // pred_fallthru
      _
    // Predicated region
    $region26: #{tpu_custom_call.1} parent=1 // pred_check
      _
    $region27: #{tpu_custom_call.1} parent=1 // pred_check_branch
      %186 = sbr.rel (0) target = $region29
    $region28: #{tpu_custom_call.1} parent=1 // pred_region
      %188 = dma.done [#allocation4], 256
    $region29: #{tpu_custom_call.1} parent=1 // pred_fallthru
      _
    %189 = vsyncpa [#allocation3], 1
    %190 = vsyncpa [#allocation4], 1

</llo_original>
